<compile_context>
chip_gen: v6e
topology: v6e:2x2x1
jax: 0.10.0
libtpu: 0.0.40
codegen_flags: <defaults>
</compile_context>

<pallas_src>
import functools

import jax
import jax.numpy as jnp
from jax.experimental import pallas as pl
from jax.experimental.pallas import tpu as pltpu


def _classifier_bn_kernel(x_ref, w1_ref, g_ref, beta_ref, w2_ref, b2_ref, o_ref,
                          *, eps: float, inv_b: float):
    # linear_1 on the MXU, native-dtype operands, f32 accumulator.
    # NOTE: b1 is intentionally omitted -- it cancels exactly under batch norm.
    h = jnp.dot(x_ref[...], w1_ref[...], preferred_element_type=jnp.float32)

    # BatchNorm1d (training-mode batch statistics), single pass, f32:
    #   mean = sum(h)/B ; var = sum(h^2)/B - mean^2 (biased, as PyTorch uses for
    #   the normalization itself).
    s = jnp.sum(h, axis=0, keepdims=True)
    ss = jnp.sum(h * h, axis=0, keepdims=True)
    mean = s * inv_b
    var = jnp.maximum(ss * inv_b - mean * mean, 0.0)

    # Fused affine: h*scale + shift   (rsqrt lowers to the EUP slot, ~free).
    scale = g_ref[...] * jax.lax.rsqrt(var + eps)
    shift = beta_ref[...] - mean * scale
    h = jnp.maximum(h * scale + shift, 0.0)          # ReLU fused in

    # linear_2: feed the MXU in the weight dtype (no forced f32 upcast of operands).
    out = jnp.dot(h.astype(w2_ref.dtype), w2_ref[...],
                  preferred_element_type=jnp.float32) + b2_ref[...]
    o_ref[...] = out.astype(o_ref.dtype)


def _classifier_nobn_kernel(x_ref, w1_ref, b1_ref, w2_ref, b2_ref, o_ref):
    # batch == 1 path: the module skips BN, so b1 must be applied.
    h = jnp.dot(x_ref[...], w1_ref[...], preferred_element_type=jnp.float32) + b1_ref[...]
    h = jnp.maximum(h, 0.0)
    out = jnp.dot(h.astype(w2_ref.dtype), w2_ref[...],
                  preferred_element_type=jnp.float32) + b2_ref[...]
    o_ref[...] = out.astype(o_ref.dtype)


@functools.partial(jax.jit, static_argnames=("eps",))
def classifier_forward(x, w1, b1, gamma, beta, w2, b2, eps: float = 1e-5):
    """x: [B, F]; w1: [F, H]; b1: [H]; gamma/beta: [H]; w2: [H, C]; b2: [C]."""
    B, F = x.shape
    H = w1.shape[1]
    C = w2.shape[1]
    # Static batch-size check, mirroring `if out.shape[0] != 1` in the PyTorch forward.
    apply_bn = (B != 1)

    # Lane-dense output: pad the class dimension up to a multiple of 128 so the
    # output store is an unmasked, full-lane vst.  Extra columns are exact zeros
    # (zero weight columns + zero bias) and are sliced off in the wrapper; under
    # jit the padding of the parameters fuses with the surrounding graph.
    LANE = 128
    c_pad = ((C + LANE - 1) // LANE) * LANE
    w2_p = jnp.zeros((H, c_pad), dtype=w2.dtype).at[:, :C].set(w2)
    b2_p = jnp.zeros((1, c_pad), dtype=jnp.float32).at[0, :C].set(b2.astype(jnp.float32))

    vmem = pltpu.MemorySpace.VMEM
    out_itemsize = jnp.dtype(x.dtype).itemsize

    if apply_bn:
        g_2d = gamma.reshape(1, H).astype(jnp.float32)
        beta_2d = beta.reshape(1, H).astype(jnp.float32)
        kernel = functools.partial(_classifier_bn_kernel, eps=eps, inv_b=1.0 / B)
        inputs = (x, w1, g_2d, beta_2d, w2_p, b2_p)
        # 2 matmuls + ~10 VPU ops per element of h for the fused BN/ReLU epilogue.
        flops = 2 * B * F * H + 2 * B * H * c_pad + 10 * B * H
        transcendentals = H  # one rsqrt per hidden feature
    else:
        b1_2d = b1.reshape(1, H).astype(jnp.float32)
        kernel = _classifier_nobn_kernel
        inputs = (x, w1, b1_2d, w2_p, b2_p)
        flops = 2 * B * F * H + 2 * B * H * c_pad + 2 * B * H
        transcendentals = 0

    bytes_accessed = (
        sum(a.size * jnp.dtype(a.dtype).itemsize for a in inputs)
        + B * c_pad * out_itemsize
    )

    out_padded = pl.pallas_call(
        kernel,
        out_shape=jax.ShapeDtypeStruct((B, c_pad), x.dtype),
        in_specs=[pl.BlockSpec(memory_space=vmem)] * len(inputs),
        out_specs=pl.BlockSpec(memory_space=vmem),
        cost_estimate=pl.CostEstimate(
            flops=flops,
            transcendentals=transcendentals,
            bytes_accessed=bytes_accessed,
        ),
        compiler_params=pltpu.CompilerParams(),
    )(*inputs)

    return out_padded[:, :C]


def reference_forward(x, w1, b1, gamma, beta, w2, b2, eps=1e-5):
    h = x @ w1 + b1
    if x.shape[0] != 1:
        mean = jnp.mean(h, axis=0, keepdims=True)
        var = jnp.mean((h - mean) ** 2, axis=0, keepdims=True)
        h = (h - mean) / jnp.sqrt(var + eps) * gamma + beta
    h = jnp.maximum(h, 0.0)
    return h @ w2 + b2


if __name__ == "__main__":
    # Small shapes consistent with the module: batch=8, input_features=32,
    # hidden_para=32, num_class=8.
    B, F, H, C = 8, 32, 32, 8

    key = jax.random.PRNGKey(0)
    kx, kw1, kb1, kw2, kb2 = jax.random.split(key, 5)

    x = jax.random.normal(kx, (B, F), dtype=jnp.float32)

    # Deterministic parameter init (PyTorch-style uniform(-1/sqrt(fan_in), 1/sqrt(fan_in))).
    lim1 = 1.0 / jnp.sqrt(F)
    w1 = jax.random.uniform(kw1, (F, H), minval=-lim1, maxval=lim1, dtype=jnp.float32)
    b1 = jax.random.uniform(kb1, (H,), minval=-lim1, maxval=lim1, dtype=jnp.float32)

    gamma = jnp.ones((H,), dtype=jnp.float32)   # BatchNorm1d default weight
    beta = jnp.zeros((H,), dtype=jnp.float32)   # BatchNorm1d default bias

    lim2 = 1.0 / jnp.sqrt(H)
    w2 = jax.random.uniform(kw2, (H, C), minval=-lim2, maxval=lim2, dtype=jnp.float32)
    b2 = jax.random.uniform(kb2, (C,), minval=-lim2, maxval=lim2, dtype=jnp.float32)

    # Main path (batch > 1, BN applied).
    out = classifier_forward(x, w1, b1, gamma, beta, w2, b2)
    jax.block_until_ready(out)
    ref = reference_forward(x, w1, b1, gamma, beta, w2, b2)
    assert out.shape == (B, C)
    assert jnp.allclose(out, ref, atol=1e-4, rtol=1e-4)

    # batch == 1 path (BN skipped, b1 applied), matching the PyTorch `if` branch.
    x1 = x[:1]
    out1 = classifier_forward(x1, w1, b1, gamma, beta, w2, b2)
    jax.block_until_ready(out1)
    ref1 = reference_forward(x1, w1, b1, gamma, beta, w2, b2)
    assert out1.shape == (1, C)
    assert jnp.allclose(out1, ref1, atol=1e-4, rtol=1e-4)

    print("KERNEL_OK")
</pallas_src>

<mosaic_0001>
module attributes {stable_mosaic.version = 11 : i64} {
  func.func @_classifier_bn_kernel(%arg0: memref<8x32xf32, #tpu.memory_space<vmem>>, %arg1: memref<32x32xf32, #tpu.memory_space<vmem>>, %arg2: memref<1x32xf32, #tpu.memory_space<vmem>>, %arg3: memref<1x32xf32, #tpu.memory_space<vmem>>, %arg4: memref<32x128xf32, #tpu.memory_space<vmem>>, %arg5: memref<1x128xf32, #tpu.memory_space<vmem>>, %arg6: memref<8x128xf32, #tpu.memory_space<vmem>>) attributes {dimension_semantics = [], scalar_prefetch = 0 : i64, scratch_operands = 0 : i64, tpu.core_type = #tpu.core_type<tc>} {
    %c0 = arith.constant 0 : index
    %c0_0 = arith.constant 0 : index
    %0 = vector.load %arg0[%c0, %c0_0] : memref<8x32xf32, #tpu.memory_space<vmem>>, vector<8x32xf32>
    %c0_1 = arith.constant 0 : index
    %c0_2 = arith.constant 0 : index
    %1 = vector.load %arg1[%c0_1, %c0_2] : memref<32x32xf32, #tpu.memory_space<vmem>>, vector<32x32xf32>
    %cst = arith.constant dense<0.000000e+00> : vector<8x32xf32>
    %2 = tpu.matmul %0, %1, %cst {dimension_numbers = #tpu.dot_dimension_numbers<[1], [0], [0], [1], [0, 0, 1, 1], [], []>} : vector<8x32xf32>, vector<32x32xf32>, vector<8x32xf32> -> vector<8x32xf32>
    %cst_3 = arith.constant dense<0.000000e+00> : vector<32xf32>
    %3 = vector.multi_reduction <add>, %2, %cst_3 [0] : vector<8x32xf32> to vector<32xf32>
    %4 = vector.shape_cast %3 : vector<32xf32> to vector<1x32xf32>
    %5 = arith.mulf %2, %2 : vector<8x32xf32>
    %cst_4 = arith.constant dense<0.000000e+00> : vector<32xf32>
    %6 = vector.multi_reduction <add>, %5, %cst_4 [0] : vector<8x32xf32> to vector<32xf32>
    %7 = vector.shape_cast %6 : vector<32xf32> to vector<1x32xf32>
    %cst_5 = arith.constant 1.250000e-01 : f32
    %8 = vector.broadcast %cst_5 : f32 to vector<1x32xf32>
    %9 = arith.mulf %4, %8 : vector<1x32xf32>
    %cst_6 = arith.constant 1.250000e-01 : f32
    %10 = vector.broadcast %cst_6 : f32 to vector<1x32xf32>
    %11 = arith.mulf %7, %10 : vector<1x32xf32>
    %12 = arith.mulf %9, %9 : vector<1x32xf32>
    %13 = arith.subf %11, %12 : vector<1x32xf32>
    %cst_7 = arith.constant 0.000000e+00 : f32
    %14 = vector.broadcast %cst_7 : f32 to vector<1x32xf32>
    %15 = arith.maximumf %13, %14 : vector<1x32xf32>
    %c0_8 = arith.constant 0 : index
    %c0_9 = arith.constant 0 : index
    %16 = vector.load %arg2[%c0_8, %c0_9] : memref<1x32xf32, #tpu.memory_space<vmem>>, vector<1x32xf32>
    %cst_10 = arith.constant 9.99999974E-6 : f32
    %17 = vector.broadcast %cst_10 : f32 to vector<1x32xf32>
    %18 = arith.addf %15, %17 : vector<1x32xf32>
    %19 = math.rsqrt %18 : vector<1x32xf32>
    %20 = arith.mulf %16, %19 : vector<1x32xf32>
    %c0_11 = arith.constant 0 : index
    %c0_12 = arith.constant 0 : index
    %21 = vector.load %arg3[%c0_11, %c0_12] : memref<1x32xf32, #tpu.memory_space<vmem>>, vector<1x32xf32>
    %22 = arith.mulf %9, %20 : vector<1x32xf32>
    %23 = arith.subf %21, %22 : vector<1x32xf32>
    %24 = vector.broadcast %20 : vector<1x32xf32> to vector<8x32xf32>
    %25 = arith.mulf %2, %24 : vector<8x32xf32>
    %26 = vector.broadcast %23 : vector<1x32xf32> to vector<8x32xf32>
    %27 = arith.addf %25, %26 : vector<8x32xf32>
    %cst_13 = arith.constant 0.000000e+00 : f32
    %28 = vector.broadcast %cst_13 : f32 to vector<8x32xf32>
    %29 = arith.maximumf %27, %28 : vector<8x32xf32>
    %c0_14 = arith.constant 0 : index
    %c0_15 = arith.constant 0 : index
    %30 = vector.load %arg4[%c0_14, %c0_15] : memref<32x128xf32, #tpu.memory_space<vmem>>, vector<32x128xf32>
    %cst_16 = arith.constant dense<0.000000e+00> : vector<8x128xf32>
    %31 = tpu.matmul %29, %30, %cst_16 {dimension_numbers = #tpu.dot_dimension_numbers<[1], [0], [0], [1], [0, 0, 1, 1], [], []>} : vector<8x32xf32>, vector<32x128xf32>, vector<8x128xf32> -> vector<8x128xf32>
    %c0_17 = arith.constant 0 : index
    %c0_18 = arith.constant 0 : index
    %32 = vector.load %arg5[%c0_17, %c0_18] : memref<1x128xf32, #tpu.memory_space<vmem>>, vector<1x128xf32>
    %33 = vector.broadcast %32 : vector<1x128xf32> to vector<8x128xf32>
    %34 = arith.addf %31, %33 : vector<8x128xf32>
    %c0_19 = arith.constant 0 : index
    %c0_20 = arith.constant 0 : index
    %35 = vector.load %arg6[%c0_19, %c0_20] : memref<8x128xf32, #tpu.memory_space<vmem>>, vector<8x128xf32>
    tpu.vector_store %arg6[%c0_19, %c0_20], %34 {strides = array<i32>} : memref<8x128xf32, #tpu.memory_space<vmem>>, vector<8x128xf32>,
    return
  }
}

</mosaic_0001>

<llo_original>
// kernel: classifier_forward.1
$region0: #{classifier_forward.1}
  #allocation0 [shape = 'u32[]', space=smem, size = 0x4, offset = 0x4, fixed_abs, tag = 'smem constant byte address 0x4 - core index']
  #allocation1 [shape = 'u32[144,128]{1,0:T(1,128)}', space=vmem, size = 0x12000, scoped, tag = 'internal scratch']
  %s0 = inlined_call_operand.vmem [shape: f32[8,32], index: 0, kind: input, shape index: {}]
  %s1 = inlined_call_operand.vmem [shape: f32[32,32], index: 1, kind: input, shape index: {}]
  %s2 = inlined_call_operand.vmem [shape: f32[1,32], index: 2, kind: input, shape index: {}]
  %s3 = inlined_call_operand.vmem [shape: f32[1,32], index: 3, kind: input, shape index: {}]
  %s4 = inlined_call_operand.vmem [shape: f32[32,128], index: 4, kind: input, shape index: {}]
  %s5 = inlined_call_operand.vmem [shape: f32[1,128], index: 5, kind: input, shape index: {}]
  %s6 = inlined_call_operand.hbm [shape: f32[8,128], index: 6, kind: output, shape index: {}]
  %s7 = sld [smem:[#allocation0]]
  $region34: #{classifier_forward.1} parent=0
    _
  %s9 = ssub.s32 1, %s7
  %s10 = scalar_select 0, %s9, %s7
  $region1: #{classifier_forward.1} parent=0
    #allocation2 [shape = 'u8[4096]{0}', space=vmem, size = 0x1000, scoped, tag = 'output window, operand 0, single buffered']
    #allocation3 [shape = 's32[1]{0}', space=sflag, size = 0x4, scoped, tag = 'scoped memory for classifier_forward.1']
    %11 = vsyncpa [#allocation3], 0
    // Predicated region
    $region2: #{classifier_forward.1} parent=1 // pred_check
      _
    $region3: #{classifier_forward.1} parent=1 // pred_check_branch
      %13 = sbr.rel (0) target = $region5
    $region4: #{classifier_forward.1} parent=1 // pred_region
      _
    $region5: #{classifier_forward.1} parent=1 // pred_fallthru
      _
    // Predicated region
    $region6: #{classifier_forward.1} parent=1 // pred_check
      _
    $region7: #{classifier_forward.1} parent=1 // pred_check_branch
      %15 = sbr.rel (0) target = $region9
    $region8: #{classifier_forward.1} parent=1 // pred_region
      _
    $region9: #{classifier_forward.1} parent=1 // pred_fallthru
      _
    // Predicated region
    $region10: #{classifier_forward.1} parent=1 // pred_check
      _
    $region11: #{classifier_forward.1} parent=1 // pred_check_branch
      %17 = sbr.rel (0) target = $region13
    $region12: #{classifier_forward.1} parent=1 // pred_region
      _
    $region13: #{classifier_forward.1} parent=1 // pred_fallthru
      _
    // Predicated region
    $region14: #{classifier_forward.1} parent=1 // pred_check
      _
    $region15: #{classifier_forward.1} parent=1 // pred_check_branch
      %19 = sbr.rel (0) target = $region17
    $region16: #{classifier_forward.1} parent=1 // pred_region
      _
    $region17: #{classifier_forward.1} parent=1 // pred_fallthru
      _
    // Predicated region
    $region18: #{classifier_forward.1} parent=1 // pred_check
      _
    $region19: #{classifier_forward.1} parent=1 // pred_check_branch
      %21 = sbr.rel (0) target = $region21
    $region20: #{classifier_forward.1} parent=1 // pred_region
      _
    $region21: #{classifier_forward.1} parent=1 // pred_fallthru
      _
    // Predicated region
    $region22: #{classifier_forward.1} parent=1 // pred_check
      _
    $region23: #{classifier_forward.1} parent=1 // pred_check_branch
      %23 = sbr.rel (0) target = $region25
    $region24: #{classifier_forward.1} parent=1 // pred_region
      _
    $region25: #{classifier_forward.1} parent=1 // pred_fallthru
      _
    %v24 = vld [vmem:[%s0] sm:$0xff]
    %v25 = vld [vmem:[%s1] sm:$0xff]
    %v26 = vld [vmem:[%s1 + $0x8] sm:$0xff]
    %v27 = vld [vmem:[%s1 + $0x10] sm:$0xff]
    %v28 = vld [vmem:[%s1 + $0x18] sm:$0xff]
    %vm29 = vcmask 261120
    %v31 = vsel %vm29, %v24, 0
    %33 = vmatprep.subr.mxu0 0.0
    %34 = vmatpush1.msra.mxu0 0.0
    %35 = vmatprep.subr.mxu0 0.0
    %36 = vmatpush1.msra.mxu0 0.0
    %37 = vmatprep.subr.mxu0 0.0
    %38 = vmatpush1.msra.mxu0 0.0
    %39 = vmatprep.subr.mxu0 0.0
    %40 = vmatpush1.msra.mxu0 0.0
    %41 = vmatprep.subr.mxu0 0.0
    %42 = vmatpush1.msra.mxu0 0.0
    %43 = vmatprep.subr.mxu0 0.0
    %44 = vmatpush1.msra.mxu0 0.0
    %45 = vmatprep.subr.mxu0 0.0
    %46 = vmatpush1.msra.mxu0 0.0
    %47 = vmatprep.subr.mxu0 0.0
    %48 = vmatpush1.msra.mxu0 0.0
    %49 = vmatprep.subr.mxu0 0.0
    %50 = vmatpush1.msra.mxu0 0.0
    %51 = vmatprep.subr.mxu0 0.0
    %52 = vmatpush1.msra.mxu0 0.0
    %53 = vmatprep.subr.mxu0 0.0
    %54 = vmatpush1.msra.mxu0 0.0
    %55 = vmatprep.subr.mxu0 0.0
    %56 = vmatpush1.msra.mxu0 0.0
    %57 = vmatprep.subr.mxu0 0.0
    %58 = vmatpush1.msra.mxu0 %v28
    %59 = vmatprep.subr.mxu0 0.0
    %60 = vmatpush1.msra.mxu0 %v27
    %61 = vmatprep.subr.mxu0 0.0
    %62 = vmatpush1.msra.mxu0 %v26
    %63 = vmatprep.subr.mxu0 0.0
    %64 = vmatpush1.msra.mxu0 %v25
    %65 = vmatprep.subr.mxu0 0.0
    %66 = vmatpush2.msra.mxu0 0.0
    %67 = vmatprep.subr.mxu0 0.0
    %68 = vmatpush2.msra.mxu0 0.0
    %69 = vmatprep.subr.mxu0 0.0
    %70 = vmatpush2.msra.mxu0 0.0
    %71 = vmatprep.subr.mxu0 0.0
    %72 = vmatpush2.msra.mxu0 0.0
    %73 = vmatprep.subr.mxu0 0.0
    %74 = vmatpush2.msra.mxu0 0.0
    %75 = vmatprep.subr.mxu0 0.0
    %76 = vmatpush2.msra.mxu0 0.0
    %77 = vmatprep.subr.mxu0 0.0
    %78 = vmatpush2.msra.mxu0 0.0
    %79 = vmatprep.subr.mxu0 0.0
    %80 = vmatpush2.msra.mxu0 0.0
    %81 = vmatprep.subr.mxu0 0.0
    %82 = vmatpush2.msra.mxu0 0.0
    %83 = vmatprep.subr.mxu0 0.0
    %84 = vmatpush2.msra.mxu0 0.0
    %85 = vmatprep.subr.mxu0 0.0
    %86 = vmatpush2.msra.mxu0 0.0
    %87 = vmatprep.subr.mxu0 0.0
    %88 = vmatpush2.msra.mxu0 0.0
    %89 = vmatprep.subr.mxu0 0.0
    %90 = vmatpush2.msra.mxu0 0.0
    %91 = vmatprep.subr.mxu0 0.0
    %92 = vmatpush2.msra.mxu0 0.0
    %93 = vmatprep.subr.mxu0 0.0
    %94 = vmatpush2.msra.mxu0 0.0
    %95 = vmatprep.subr.mxu0 0.0
    %96 = vmatpush2.msra.mxu0 0.0
    %97 = vmatprep.mubr.f32.mxu0 0.0
    %98 = vmatmul.mubr.f32.gmra.mxu0 %v31
    %v99 = vpop.f32.mrf.mxu0
    %v100 = vadd.f32 0.0, %v99
    %v101 = vpop.f32.mrf.mxu0
    %102 = vdwg.mxu0
    %v103 = vsel %vm29, %v100, 0.0
    %v104 = vrot.slane %v103, 4
    %v105 = vadd.f32 %v103, %v104
    %v106 = vrot.slane %v105, 2
    %v107 = vadd.f32 %v105, %v106
    %v108 = vrot.slane %v107, 1
    %v109 = vadd.f32 %v107, %v108
    %v110 = vmul.f32 %v100, %v100
    %v111 = vsel %vm29, %v110, 0.0
    %v112 = vrot.slane %v111, 4
    %v113 = vadd.f32 %v111, %v112
    %v114 = vrot.slane %v113, 2
    %v115 = vadd.f32 %v113, %v114
    %v116 = vrot.slane %v115, 1
    %v117 = vadd.f32 %v115, %v116
    %v118 = vmul.f32 %v109, 0.125
    %v119 = vmul.f32 %v117, 0.125
    %v120 = vmul.f32 %v118, %v118
    %v121 = vsub.f32 %v119, %v120
    %v122 = vmax.f32 %v121, 0.0
    %v123 = vld [vmem:[%s2] sm:$0x1]
    %v124 = vadd.f32 %v122, 1e-05
    %v125 = vrsqrt.pop %v124
    %v126 = vmul.f32 %v123, %v125
    %v127 = vld [vmem:[%s3] sm:$0x1]
    %v128 = vmul.f32 %v118, %v126
    %v129 = vsub.f32 %v127, %v128
    %v131 = vlaneseq
    %v132 = vshrl.u32 %v131, 7
    %v133 = vsub.s32 0, %v132
    %v134 = vrot.slane %v126, %v133
    %v136 = vmul.f32 %v100, %v134
    %v138 = vlaneseq
    %v139 = vshrl.u32 %v138, 7
    %v140 = vsub.s32 0, %v139
    %v141 = vrot.slane %v129, %v140
    %v143 = vadd.f32 %v136, %v141
    %v144 = vmax.f32 %v143, 0.0
    %v145 = vld [vmem:[%s4] sm:$0xff]
    %v146 = vld [vmem:[%s4 + $0x8] sm:$0xff]
    %v147 = vld [vmem:[%s4 + $0x10] sm:$0xff]
    %v148 = vld [vmem:[%s4 + $0x18] sm:$0xff]
    %v149 = vld [vmem:[%s5] sm:$0x1]
    %v151 = vlaneseq
    %v152 = vshrl.u32 %v151, 7
    %v153 = vsub.s32 0, %v152
    %v154 = vrot.slane %v149, %v153
    %v157 = vsel %vm29, %v144, 0
    %159 = vmatprep.subr.mxu0 0.0
    %160 = vmatpush1.msra.mxu0 0.0
    %161 = vmatprep.subr.mxu0 0.0
    %162 = vmatpush1.msra.mxu0 0.0
    %163 = vmatprep.subr.mxu0 0.0
    %164 = vmatpush1.msra.mxu0 0.0
    %165 = vmatprep.subr.mxu0 0.0
    %166 = vmatpush1.msra.mxu0 0.0
    %167 = vmatprep.subr.mxu0 0.0
    %168 = vmatpush1.msra.mxu0 0.0
    %169 = vmatprep.subr.mxu0 0.0
    %170 = vmatpush1.msra.mxu0 0.0
    %171 = vmatprep.subr.mxu0 0.0
    %172 = vmatpush1.msra.mxu0 0.0
    %173 = vmatprep.subr.mxu0 0.0
    %174 = vmatpush1.msra.mxu0 0.0
    %175 = vmatprep.subr.mxu0 0.0
    %176 = vmatpush1.msra.mxu0 0.0
    %177 = vmatprep.subr.mxu0 0.0
    %178 = vmatpush1.msra.mxu0 0.0
    %179 = vmatprep.subr.mxu0 0.0
    %180 = vmatpush1.msra.mxu0 0.0
    %181 = vmatprep.subr.mxu0 0.0
    %182 = vmatpush1.msra.mxu0 0.0
    %183 = vmatprep.subr.mxu0 0.0
    %184 = vmatpush1.msra.mxu0 %v148
    %185 = vmatprep.subr.mxu0 0.0
    %186 = vmatpush1.msra.mxu0 %v147
    %187 = vmatprep.subr.mxu0 0.0
    %188 = vmatpush1.msra.mxu0 %v146
    %189 = vmatprep.subr.mxu0 0.0
    %190 = vmatpush1.msra.mxu0 %v145
    %191 = vmatprep.subr.mxu0 0.0
    %192 = vmatpush2.msra.mxu0 0.0
    %193 = vmatprep.subr.mxu0 0.0
    %194 = vmatpush2.msra.mxu0 0.0
    %195 = vmatprep.subr.mxu0 0.0
    %196 = vmatpush2.msra.mxu0 0.0
    %197 = vmatprep.subr.mxu0 0.0
    %198 = vmatpush2.msra.mxu0 0.0
    %199 = vmatprep.subr.mxu0 0.0
    %200 = vmatpush2.msra.mxu0 0.0
    %201 = vmatprep.subr.mxu0 0.0
    %202 = vmatpush2.msra.mxu0 0.0
    %203 = vmatprep.subr.mxu0 0.0
    %204 = vmatpush2.msra.mxu0 0.0
    %205 = vmatprep.subr.mxu0 0.0
    %206 = vmatpush2.msra.mxu0 0.0
    %207 = vmatprep.subr.mxu0 0.0
    %208 = vmatpush2.msra.mxu0 0.0
    %209 = vmatprep.subr.mxu0 0.0
    %210 = vmatpush2.msra.mxu0 0.0
    %211 = vmatprep.subr.mxu0 0.0
    %212 = vmatpush2.msra.mxu0 0.0
    %213 = vmatprep.subr.mxu0 0.0
    %214 = vmatpush2.msra.mxu0 0.0
    %215 = vmatprep.subr.mxu0 0.0
    %216 = vmatpush2.msra.mxu0 0.0
    %217 = vmatprep.subr.mxu0 0.0
    %218 = vmatpush2.msra.mxu0 0.0
    %219 = vmatprep.subr.mxu0 0.0
    %220 = vmatpush2.msra.mxu0 0.0
    %221 = vmatprep.subr.mxu0 0.0
    %222 = vmatpush2.msra.mxu0 0.0
    %223 = vmatprep.mubr.f32.mxu0 0.0
    %224 = vmatmul.mubr.f32.gmra.mxu0 %v157
    %v225 = vpop.f32.mrf.mxu0
    %v226 = vadd.f32 %v154, %v225
    %v227 = vpop.f32.mrf.mxu0
    %228 = vdwg.mxu0
    %229 = vst [vmem:[#allocation2] sm:$0xff] %v226
    // Predicated region
    $region26: #{classifier_forward.1} parent=1 // pred_check
      _
    $region27: #{classifier_forward.1} parent=1 // pred_check_branch
      %231 = sbr.rel (0) target = $region29
    $region28: #{classifier_forward.1} parent=1 // pred_region
      %s233 = ssub.s32 128, 128
      %234 = vsyncadd [#allocation3], %s233
      %s236 = sshll.u32 [#allocation2], 4
      %s237 = int_to_ptr.vmem [resolvable:$true] %s236
      %239 = dma.vmem_to_hbm [thread:$0]  %s237, 128, %s6, [#allocation3]
    $region29: #{classifier_forward.1} parent=1 // pred_fallthru
      _
    // Predicated region
    $region30: #{classifier_forward.1} parent=1 // pred_check
      _
    $region31: #{classifier_forward.1} parent=1 // pred_check_branch
      %241 = sbr.rel (0) target = $region33
    $region32: #{classifier_forward.1} parent=1 // pred_region
      %242 = dma.done [#allocation3], 128
    $region33: #{classifier_forward.1} parent=1 // pred_fallthru
      _
    %243 = vsyncpa [#allocation3], 1

</llo_original>
